<compile_context>
chip_gen: v6e
topology: v6e:2x2x1
jax: 0.10.0
libtpu: 0.0.40
codegen_flags: <defaults>
</compile_context>

<pallas_src>
import jax
import jax.numpy as jnp
from jax.experimental import pallas as pl
from jax.experimental.pallas import tpu as pltpu

IN_FEATURES = 32
OUT_FEATURES = 10

_SUBLANE = 8
_MAX_BATCH_TILE = 8192     # rows per grid step; amortizes ~0.35 us per-step overhead
_MIN_SPLIT_TILE = 1024     # split into >= 2 tiles once batch >= 2x this (v7x: 2 TCs)
_VMEM_LIMIT_BYTES = 32 * 1024 * 1024   # explicit so v5e's 16 MiB default can't bite


def _round_up(x, m):
    return (x + m - 1) // m * m


def _cdiv(a, b):
    return (a + b - 1) // b


def _fused_complex_linear_kernel(x_ref, w_ref, o_ref):
    # One MXU pass per batch tile: (TB, 2K) @ (2K, 2N) -> (TB, 2N), f32 accumulate.
    o_ref[...] = jnp.dot(x_ref[...], w_ref[...],
                         preferred_element_type=jnp.float32)


def complex_linear(x_complex, w_complex):
    """F.linear(x, W): x (B, K) complex64, W (N, K) complex64 -> (B, N) complex64."""
    B, K = x_complex.shape
    N, K2 = w_complex.shape
    assert K == K2

    # ---- weight prep: one-time O(2K x 2N) work on a 64x20 array (free) ------
    wr_t = jnp.real(w_complex).astype(jnp.float32).T   # (K, N)
    wi_t = jnp.imag(w_complex).astype(jnp.float32).T   # (K, N)
    # Row 2k is consumed by Re(x[:, k]); row 2k+1 by Im(x[:, k]).
    # Output columns are block form [Re_0..Re_{N-1} | Im_0..Im_{N-1}].
    row_re = jnp.concatenate([wr_t, wi_t], axis=1)     # (K, 2N)
    row_im = jnp.concatenate([-wi_t, wr_t], axis=1)    # (K, 2N)
    w_blk = jnp.stack([row_re, row_im], axis=1).reshape(2 * K, 2 * N)

    # ---- x as interleaved (re, im) f32: a single fused XLA pass --------------
    # (bitcast_convert_type does not support complex64, so this pass is the
    #  minimum legal data movement to get f32 data in front of the kernel)
    x_il = jnp.stack([jnp.real(x_complex), jnp.imag(x_complex)],
                     axis=-1).astype(jnp.float32).reshape(B, 2 * K)

    # ---- adaptive batch tiling (multiple of 8 rows, tiny tail padding) -------
    b_pad = _round_up(max(B, _SUBLANE), _SUBLANE)
    n_tiles = _cdiv(b_pad, _MAX_BATCH_TILE)
    if n_tiles == 1 and b_pad >= 2 * _MIN_SPLIT_TILE:
        n_tiles = 2                      # give v7x's two TensorCores a block each
    tb = _round_up(_cdiv(b_pad, n_tiles), _SUBLANE)
    b_full = tb * n_tiles                # waste < 8 rows per tile
    if b_full != B:
        x_il = jnp.pad(x_il, ((0, b_full - B), (0, 0)))

    two_k = 2 * K
    two_n = 2 * N

    out = pl.pallas_call(
        _fused_complex_linear_kernel,
        out_shape=jax.ShapeDtypeStruct((b_full, two_n), jnp.float32),
        grid=(n_tiles,),
        in_specs=[
            pl.BlockSpec((tb, two_k), lambda i: (i, 0)),      # batch tile of x
            pl.BlockSpec((two_k, two_n), lambda i: (0, 0)),   # whole weight block
        ],
        out_specs=pl.BlockSpec((tb, two_n), lambda i: (i, 0)),
        compiler_params=pltpu.CompilerParams(
            dimension_semantics=("parallel",),
            vmem_limit_bytes=_VMEM_LIMIT_BYTES),
    )(x_il, w_blk)

    # Cheap epilogue on the narrow (B, 2N) result only.
    out_r = out[:B, :N]
    out_i = out[:B, N:two_n]
    return jax.lax.complex(out_r, out_i).astype(jnp.complex64)


class Net:
    """JAX mirror of the PyTorch Net: one complex linear layer,
    weight_r = torch.ones(10, 32, dtype=torch.complex64)."""

    def __init__(self):
        # torch.ones(..., dtype=complex64) -> real part 1.0, imag part 0.0
        self.weight_r = jnp.ones((OUT_FEATURES, IN_FEATURES), dtype=jnp.complex64)

    def forward(self, x):
        return complex_linear(x, self.weight_r)


if __name__ == "__main__":
    key = jax.random.PRNGKey(0)
    k_r, k_i = jax.random.split(key)
    batch = 8
    x_real = jax.random.normal(k_r, (batch, IN_FEATURES), dtype=jnp.float32)
    x_imag = jax.random.normal(k_i, (batch, IN_FEATURES), dtype=jnp.float32)
    x = jax.lax.complex(x_real, x_imag).astype(jnp.complex64)

    net = Net()
    out = net.forward(x)
    out = jax.block_until_ready(out)

    # Reference check against plain JAX complex matmul (x @ W^T).
    ref = x @ net.weight_r.T
    assert out.shape == (batch, OUT_FEATURES)
    assert out.dtype == jnp.complex64
    assert jnp.allclose(out, ref, atol=1e-4, rtol=1e-4)

    print("KERNEL_OK")
</pallas_src>

<mosaic_0001>
module attributes {stable_mosaic.version = 11 : i64} {
  func.func @_fused_complex_linear_kernel(%arg0: i32, %arg1: memref<8x64xf32, #tpu.memory_space<vmem>>, %arg2: memref<64x20xf32, #tpu.memory_space<vmem>>, %arg3: memref<8x20xf32, #tpu.memory_space<vmem>>) attributes {dimension_semantics = [#tpu.dimension_semantics<parallel>], iteration_bounds = array<i64: 1>, scalar_prefetch = 0 : i64, scratch_operands = 0 : i64, tpu.core_type = #tpu.core_type<tc>, window_params = [{transform_indices = @transform_0, window_bounds = array<i64: 8, 64>}, {pipeline_mode = #tpu.pipeline_mode<synchronous>, transform_indices = @transform_1, window_bounds = array<i64: 64, 20>}, {transform_indices = @transform_2, window_bounds = array<i64: 8, 20>}]} {
    %c0 = arith.constant 0 : index
    %c0_0 = arith.constant 0 : index
    %0 = vector.load %arg1[%c0, %c0_0] : memref<8x64xf32, #tpu.memory_space<vmem>>, vector<8x64xf32>
    %c0_1 = arith.constant 0 : index
    %c0_2 = arith.constant 0 : index
    %1 = vector.load %arg2[%c0_1, %c0_2] : memref<64x20xf32, #tpu.memory_space<vmem>>, vector<64x20xf32>
    %cst = arith.constant dense<0.000000e+00> : vector<8x20xf32>
    %2 = tpu.matmul %0, %1, %cst {dimension_numbers = #tpu.dot_dimension_numbers<[1], [0], [0], [1], [0, 0, 1, 1], [], []>} : vector<8x64xf32>, vector<64x20xf32>, vector<8x20xf32> -> vector<8x20xf32>
    %c0_3 = arith.constant 0 : index
    %c0_4 = arith.constant 0 : index
    %3 = vector.load %arg3[%c0_3, %c0_4] : memref<8x20xf32, #tpu.memory_space<vmem>>, vector<8x20xf32>
    tpu.vector_store %arg3[%c0_3, %c0_4], %2 {strides = array<i32>} : memref<8x20xf32, #tpu.memory_space<vmem>>, vector<8x20xf32>,
    return
  }
  func.func @transform_0(%arg0: i32) -> (i32, i32) {
    %c0_i32 = arith.constant 0 : i32
    %c0_i32_0 = arith.constant 0 : i32
    return %arg0, %c0_i32 : i32, i32
  }
  func.func @transform_1(%arg0: i32) -> (i32, i32) {
    %c0_i32 = arith.constant 0 : i32
    %c0_i32_0 = arith.constant 0 : i32
    %c0_i32_1 = arith.constant 0 : i32
    return %c0_i32, %c0_i32_0 : i32, i32
  }
  func.func @transform_2(%arg0: i32) -> (i32, i32) {
    %c0_i32 = arith.constant 0 : i32
    %c0_i32_0 = arith.constant 0 : i32
    return %arg0, %c0_i32 : i32, i32
  }
}

</mosaic_0001>

<llo_original>
// kernel: tpu_custom_call.1
$region0: #{tpu_custom_call.1}
  #allocation0 [shape = 'u32[]', space=smem, size = 0x4, offset = 0x4, fixed_abs, tag = 'smem constant byte address 0x4 - core index']
  #allocation1 [shape = 'u32[144,128]{1,0:T(1,128)}', space=vmem, size = 0x12000, scoped, tag = 'internal scratch']
  %s0 = inlined_call_operand.vmem [shape: f32[8,64], index: 0, kind: input, shape index: {}]
  %s1 = inlined_call_operand.vmem [shape: f32[64,20], index: 1, kind: input, shape index: {}]
  %s2 = inlined_call_operand.hbm [shape: f32[8,20], index: 2, kind: output, shape index: {}]
  %s3 = sld [smem:[#allocation0]]
  $region18: #{tpu_custom_call.1} parent=0
    _
  %s5 = ssub.s32 1, %s3
  %s6 = scalar_select 0, %s5, %s3
  $region1: #{tpu_custom_call.1} parent=0
    #allocation2 [shape = 'u8[4096]{0}', space=vmem, size = 0x1000, scoped, tag = 'output window, operand 0, single buffered']
    #allocation3 [shape = 's32[1]{0}', space=sflag, size = 0x4, scoped, tag = 'scoped memory for tpu_custom_call.1']
    %7 = vsyncpa [#allocation3], 0
    // Predicated region
    $region2: #{tpu_custom_call.1} parent=1 // pred_check
      _
    $region3: #{tpu_custom_call.1} parent=1 // pred_check_branch
      %9 = sbr.rel (0) target = $region5
    $region4: #{tpu_custom_call.1} parent=1 // pred_region
      _
    $region5: #{tpu_custom_call.1} parent=1 // pred_fallthru
      _
    // Predicated region
    $region6: #{tpu_custom_call.1} parent=1 // pred_check
      _
    $region7: #{tpu_custom_call.1} parent=1 // pred_check_branch
      %11 = sbr.rel (0) target = $region9
    $region8: #{tpu_custom_call.1} parent=1 // pred_region
      _
    $region9: #{tpu_custom_call.1} parent=1 // pred_fallthru
      _
    %v12 = vld [vmem:[%s0] sm:$0xff]
    %v13 = vld [vmem:[%s1] sm:$0xff]
    %v14 = vld [vmem:[%s1 + $0x8] sm:$0xff]
    %v15 = vld [vmem:[%s1 + $0x10] sm:$0xff]
    %v16 = vld [vmem:[%s1 + $0x18] sm:$0xff]
    %v17 = vld [vmem:[%s1 + $0x20] sm:$0xff]
    %v18 = vld [vmem:[%s1 + $0x28] sm:$0xff]
    %v19 = vld [vmem:[%s1 + $0x30] sm:$0xff]
    %v20 = vld [vmem:[%s1 + $0x38] sm:$0xff]
    %vm21 = vcmask 523264
    %v23 = vsel %vm21, %v12, 0
    %25 = vmatprep.subr.mxu0 0.0
    %26 = vmatpush1.msra.mxu0 0.0
    %27 = vmatprep.subr.mxu0 0.0
    %28 = vmatpush1.msra.mxu0 0.0
    %29 = vmatprep.subr.mxu0 0.0
    %30 = vmatpush1.msra.mxu0 0.0
    %31 = vmatprep.subr.mxu0 0.0
    %32 = vmatpush1.msra.mxu0 0.0
    %33 = vmatprep.subr.mxu0 0.0
    %34 = vmatpush1.msra.mxu0 0.0
    %35 = vmatprep.subr.mxu0 0.0
    %36 = vmatpush1.msra.mxu0 0.0
    %37 = vmatprep.subr.mxu0 0.0
    %38 = vmatpush1.msra.mxu0 0.0
    %39 = vmatprep.subr.mxu0 0.0
    %40 = vmatpush1.msra.mxu0 0.0
    %41 = vmatprep.subr.mxu0 0.0
    %42 = vmatpush1.msra.mxu0 %v20
    %43 = vmatprep.subr.mxu0 0.0
    %44 = vmatpush1.msra.mxu0 %v19
    %45 = vmatprep.subr.mxu0 0.0
    %46 = vmatpush1.msra.mxu0 %v18
    %47 = vmatprep.subr.mxu0 0.0
    %48 = vmatpush1.msra.mxu0 %v17
    %49 = vmatprep.subr.mxu0 0.0
    %50 = vmatpush1.msra.mxu0 %v16
    %51 = vmatprep.subr.mxu0 0.0
    %52 = vmatpush1.msra.mxu0 %v15
    %53 = vmatprep.subr.mxu0 0.0
    %54 = vmatpush1.msra.mxu0 %v14
    %55 = vmatprep.subr.mxu0 0.0
    %56 = vmatpush1.msra.mxu0 %v13
    %57 = vmatprep.subr.mxu0 0.0
    %58 = vmatpush2.msra.mxu0 0.0
    %59 = vmatprep.subr.mxu0 0.0
    %60 = vmatpush2.msra.mxu0 0.0
    %61 = vmatprep.subr.mxu0 0.0
    %62 = vmatpush2.msra.mxu0 0.0
    %63 = vmatprep.subr.mxu0 0.0
    %64 = vmatpush2.msra.mxu0 0.0
    %65 = vmatprep.subr.mxu0 0.0
    %66 = vmatpush2.msra.mxu0 0.0
    %67 = vmatprep.subr.mxu0 0.0
    %68 = vmatpush2.msra.mxu0 0.0
    %69 = vmatprep.subr.mxu0 0.0
    %70 = vmatpush2.msra.mxu0 0.0
    %71 = vmatprep.subr.mxu0 0.0
    %72 = vmatpush2.msra.mxu0 0.0
    %73 = vmatprep.subr.mxu0 0.0
    %74 = vmatpush2.msra.mxu0 0.0
    %75 = vmatprep.subr.mxu0 0.0
    %76 = vmatpush2.msra.mxu0 0.0
    %77 = vmatprep.subr.mxu0 0.0
    %78 = vmatpush2.msra.mxu0 0.0
    %79 = vmatprep.subr.mxu0 0.0
    %80 = vmatpush2.msra.mxu0 0.0
    %81 = vmatprep.subr.mxu0 0.0
    %82 = vmatpush2.msra.mxu0 0.0
    %83 = vmatprep.subr.mxu0 0.0
    %84 = vmatpush2.msra.mxu0 0.0
    %85 = vmatprep.subr.mxu0 0.0
    %86 = vmatpush2.msra.mxu0 0.0
    %87 = vmatprep.subr.mxu0 0.0
    %88 = vmatpush2.msra.mxu0 0.0
    %89 = vmatprep.mubr.f32.mxu0 0.0
    %90 = vmatmul.mubr.f32.gmra.mxu0 %v23
    %v91 = vpop.f32.mrf.mxu0
    %v92 = vadd.f32 0.0, %v91
    %v93 = vpop.f32.mrf.mxu0
    %94 = vdwg.mxu0
    %vm95 = vcmask 162816
    %96 = vst.msk [vmem:[#allocation2] sm:$0xff] %vm95, %v92
    // Predicated region
    $region10: #{tpu_custom_call.1} parent=1 // pred_check
      _
    $region11: #{tpu_custom_call.1} parent=1 // pred_check_branch
      %98 = sbr.rel (0) target = $region13
    $region12: #{tpu_custom_call.1} parent=1 // pred_region
      %s100 = ssub.s32 128, 128
      %101 = vsyncadd [#allocation3], %s100
      %s103 = sshll.u32 [#allocation2], 4
      %s104 = int_to_ptr.vmem [resolvable:$true] %s103
      %106 = dma.vmem_to_hbm [thread:$0]  %s104, 128, %s2, [#allocation3]
    $region13: #{tpu_custom_call.1} parent=1 // pred_fallthru
      _
    // Predicated region
    $region14: #{tpu_custom_call.1} parent=1 // pred_check
      _
    $region15: #{tpu_custom_call.1} parent=1 // pred_check_branch
      %108 = sbr.rel (0) target = $region17
    $region16: #{tpu_custom_call.1} parent=1 // pred_region
      %109 = dma.done [#allocation3], 128
    $region17: #{tpu_custom_call.1} parent=1 // pred_fallthru
      _
    %110 = vsyncpa [#allocation3], 1

</llo_original>
